<compile_context>
chip_gen: v6e
topology: v6e:2x2x1
jax: 0.10.0
libtpu: 0.0.40
codegen_flags: <defaults>
</compile_context>

<pallas_src>
import functools
import math

import jax
import jax.numpy as jnp
from jax import lax
from jax.experimental import pallas as pl
from jax.experimental.pallas import tpu as pltpu


def _lora_kernel(x_ref, w_ref, xa_ref, wb_ref, b_ref, o_ref, acc_ref, *,
                 precision):
    # x_ref : (tm, tk)     w_ref : (tn, tk)     xa_ref: (tm, rp)
    # wb_ref: (tn, rp)     b_ref : (1, tn)      o_ref : (tm, tn)
    # acc_ref: (tm, tn) f32 scratch
    k = pl.program_id(2)

    @pl.when(k == 0)
    def _():
        acc_ref[...] = jnp.zeros_like(acc_ref)

    # Base path: acc += x @ W^T.  W stays in its PyTorch (D_out, D_in)
    # layout; the contraction is expressed via dot_general (no HBM transpose).
    acc_ref[...] += lax.dot_general(
        x_ref[...], w_ref[...],
        dimension_numbers=(((1,), (1,)), ((), ())),
        preferred_element_type=jnp.float32,
        precision=precision)

    # Epilogue, once per (i, j): low-rank update xa @ B^T, bias, cast, store.
    @pl.when(k == pl.num_programs(2) - 1)
    def _():
        lora = lax.dot_general(
            xa_ref[...], wb_ref[...],
            dimension_numbers=(((1,), (1,)), ((), ())),
            preferred_element_type=jnp.float32,
            precision=precision)
        o_ref[...] = (acc_ref[...] + lora
                      + b_ref[...].astype(jnp.float32)).astype(o_ref.dtype)


def _round_up(v, m):
    return ((v + m - 1) // m) * m


def _pad2d(a, rows, cols):
    r, c = a.shape
    if (r, c) == (rows, cols):
        return a
    return jnp.pad(a, ((0, rows - r), (0, cols - c)))


def lora_layer(x, w, b, w_a, w_b, *, tm=512, tn=512, tk=1024,
               compute_dtype=jnp.bfloat16):
    """y = x @ W^T + b + (x @ A^T) @ B^T   (PyTorch nn.Linear conventions).

    x: (..., D_in); w: (D_out, D_in); b: (D_out,); w_a: (r, D_in);
    w_b: (D_out, r).  compute_dtype defaults to bf16 (MXU-native on
    v5e/v6e/v7x); accumulation is always f32 in-kernel.  Pass
    compute_dtype=jnp.float32 for an exact (HIGHEST precision) path.
    """
    *lead, D_in = x.shape
    D_out = w.shape[0]
    r = w_a.shape[0]
    M = math.prod(lead) if lead else 1
    out_dtype = x.dtype

    cdt = jnp.dtype(out_dtype if compute_dtype is None else compute_dtype)
    precision = (lax.Precision.HIGHEST if cdt == jnp.dtype(jnp.float32)
                 else lax.Precision.DEFAULT)

    x2 = x.reshape(M, D_in).astype(cdt)
    w_c = w.astype(cdt)
    wa_c = w_a.astype(cdt)
    wb_c = w_b.astype(cdt)

    # Low-rank first stage hoisted out of the kernel (~r/D_out of the FLOPs).
    # Keeps the inner loop a single pure MXU accumulate and frees the j grid
    # axis for megacore parallelism.
    xa = lax.dot_general(
        x2, wa_c, dimension_numbers=(((1,), (1,)), ((), ())),
        preferred_element_type=jnp.float32, precision=precision).astype(cdt)

    # Tile selection: large by default; clamp to the problem so small shapes
    # need no padding at all.  tn stays a multiple of 256 at its default.
    tm = min(tm, _round_up(M, 8))
    if D_out <= tn:
        tn = D_out
    if D_in <= tk:
        tk = D_in
    rp = _round_up(r, 8)  # sublane-friendly, but never inflated to 128

    Kp = _round_up(D_in, tk)
    Np = _round_up(D_out, tn)

    # Rows of x / xa / output are never padded: the m grid uses cdiv and the
    # ragged last row tile only touches rows that are discarded anyway.
    x_p = _pad2d(x2, M, Kp)
    xa_p = _pad2d(xa, M, rp)
    w_p = _pad2d(w_c, Np, Kp)                       # PyTorch layout preserved
    wb_p = _pad2d(wb_c, Np, rp)
    b_p = _pad2d(b.reshape(1, D_out), 1, Np)        # bias kept in f32

    grid = (pl.cdiv(M, tm), Np // tn, Kp // tk)

    # VMEM limit derived from the real double-buffered footprint + headroom
    # (portable across 128 MiB v5e/v6e and 64 MiB-per-TC v7x).
    in_isz = cdt.itemsize
    out_isz = jnp.dtype(out_dtype).itemsize
    b_isz = jnp.dtype(b_p.dtype).itemsize
    blk_bytes = ((tm * tk + tn * tk + tm * rp + tn * rp) * in_isz
                 + tn * b_isz + tm * tn * out_isz)
    acc_bytes = tm * tn * 4
    vmem_limit = int(min(100 * 2**20, 2 * blk_bytes + acc_bytes + 16 * 2**20))

    cost = pl.CostEstimate(
        flops=int(2 * M * Np * Kp + 2 * M * rp * Np),
        transcendentals=0,
        bytes_accessed=int((M * Kp + Np * Kp + M * rp + Np * rp) * in_isz
                           + Np * b_isz + M * D_out * out_isz))

    out = pl.pallas_call(
        functools.partial(_lora_kernel, precision=precision),
        out_shape=jax.ShapeDtypeStruct((M, D_out), out_dtype),
        grid_spec=pltpu.PrefetchScalarGridSpec(
            num_scalar_prefetch=0,
            grid=grid,
            in_specs=[
                pl.BlockSpec((tm, tk), lambda i, j, k: (i, k)),   # x
                pl.BlockSpec((tn, tk), lambda i, j, k: (j, k)),   # W
                pl.BlockSpec((tm, rp), lambda i, j, k: (i, 0)),   # xa = x @ A^T
                pl.BlockSpec((tn, rp), lambda i, j, k: (j, 0)),   # B (LoRA up)
                pl.BlockSpec((1, tn), lambda i, j, k: (0, j)),    # bias
            ],
            out_specs=pl.BlockSpec((tm, tn), lambda i, j, k: (i, j)),
            scratch_shapes=[pltpu.VMEM((tm, tn), jnp.float32)],
        ),
        compiler_params=pltpu.CompilerParams(
            # xa is precomputed, so both i and j are safely parallel
            # (megacore / v7x two-TC sharding); k is the reduction axis.
            dimension_semantics=("parallel", "parallel", "arbitrary"),
            vmem_limit_bytes=vmem_limit,
        ),
        cost_estimate=cost,
    )(x_p, w_p, xa_p, wb_p, b_p)

    return out.reshape(*lead, D_out)


if __name__ == "__main__":
    # Small shapes consistent with the module: tokens through linear layers.
    B, S, D_in, D_out, R = 2, 8, 32, 32, 4

    key = jax.random.PRNGKey(0)
    kx, kw, kb, ka, kbb = jax.random.split(key, 5)

    x = jax.random.normal(kx, (B, S, D_in), dtype=jnp.float32)
    w = jax.random.normal(kw, (D_out, D_in), dtype=jnp.float32) * 0.05
    b = jax.random.normal(kb, (D_out,), dtype=jnp.float32) * 0.01
    w_a = jax.random.normal(ka, (R, D_in), dtype=jnp.float32) * 0.05
    w_b = jax.random.normal(kbb, (D_out, R), dtype=jnp.float32) * 0.05

    # Pure-JAX reference (same math as the PyTorch module), highest precision.
    hp = lax.Precision.HIGHEST
    ref = (jnp.einsum("bsd,od->bso", x, w, precision=hp) + b
           + jnp.einsum("bsr,or->bso",
                        jnp.einsum("bsd,rd->bsr", x, w_a, precision=hp),
                        w_b, precision=hp))

    # Exact f32 path.
    y_f32 = jax.block_until_ready(
        lora_layer(x, w, b, w_a, w_b, compute_dtype=jnp.float32))
    assert y_f32.shape == (B, S, D_out)
    assert jnp.allclose(y_f32, ref, atol=1e-4, rtol=1e-4)

    # Default bf16-compute path (f32 accumulation in-kernel).
    y_bf16 = jax.block_until_ready(lora_layer(x, w, b, w_a, w_b))
    assert y_bf16.shape == (B, S, D_out)
    assert jnp.allclose(y_bf16, ref, atol=5e-2, rtol=5e-2)

    print("KERNEL_OK")
</pallas_src>

<mosaic_0001>
module attributes {stable_mosaic.version = 11 : i64} {
  func.func @_lora_kernel(%arg0: i32, %arg1: i32, %arg2: i32, %arg3: memref<16x32xf32, #tpu.memory_space<vmem>>, %arg4: memref<32x32xf32, #tpu.memory_space<vmem>>, %arg5: memref<16x8xf32, #tpu.memory_space<vmem>>, %arg6: memref<32x8xf32, #tpu.memory_space<vmem>>, %arg7: memref<1x32xf32, #tpu.memory_space<vmem>>, %arg8: memref<16x32xf32, #tpu.memory_space<vmem>>, %arg9: memref<16x32xf32, #tpu.memory_space<vmem>>) attributes {dimension_semantics = [#tpu.dimension_semantics<parallel>, #tpu.dimension_semantics<parallel>, #tpu.dimension_semantics<arbitrary>], iteration_bounds = array<i64: 1, 1, 1>, scalar_prefetch = 0 : i64, scratch_operands = 1 : i64, tpu.core_type = #tpu.core_type<tc>, window_params = [{transform_indices = @transform_0, window_bounds = array<i64: 16, 32>}, {transform_indices = @transform_1, window_bounds = array<i64: 32, 32>}, {transform_indices = @transform_2, window_bounds = array<i64: 16, 8>}, {transform_indices = @transform_3, window_bounds = array<i64: 32, 8>}, {transform_indices = @transform_4, window_bounds = array<i64: 1, 32>}, {transform_indices = @transform_5, window_bounds = array<i64: 16, 32>}]} {
    %c0_i32 = arith.constant 0 : i32
    %0 = arith.cmpi eq, %arg2, %c0_i32 : i32
    %1 = arith.extui %0 : i1 to i32
    %c0_i32_0 = arith.constant 0 : i32
    %2 = arith.cmpi ne, %1, %c0_i32_0 : i32
    scf.if %2 {
      %cst_10 = arith.constant 0.000000e+00 : f32
      %12 = vector.broadcast %cst_10 : f32 to vector<16x32xf32>
      %c0_11 = arith.constant 0 : index
      %c0_12 = arith.constant 0 : index
      %13 = vector.load %arg9[%c0_11, %c0_12] : memref<16x32xf32, #tpu.memory_space<vmem>>, vector<16x32xf32>
      tpu.vector_store %arg9[%c0_11, %c0_12], %12 {strides = array<i32>} : memref<16x32xf32, #tpu.memory_space<vmem>>, vector<16x32xf32>,
    } else {
    }
    %c0 = arith.constant 0 : index
    %c0_1 = arith.constant 0 : index
    %3 = vector.load %arg9[%c0, %c0_1] : memref<16x32xf32, #tpu.memory_space<vmem>>, vector<16x32xf32>
    %c0_2 = arith.constant 0 : index
    %c0_3 = arith.constant 0 : index
    %4 = vector.load %arg3[%c0_2, %c0_3] : memref<16x32xf32, #tpu.memory_space<vmem>>, vector<16x32xf32>
    %c0_4 = arith.constant 0 : index
    %c0_5 = arith.constant 0 : index
    %5 = vector.load %arg4[%c0_4, %c0_5] : memref<32x32xf32, #tpu.memory_space<vmem>>, vector<32x32xf32>
    %cst = arith.constant dense<0.000000e+00> : vector<16x32xf32>
    %6 = tpu.matmul %4, %5, %cst {dimension_numbers = #tpu.dot_dimension_numbers<[1], [1], [0], [0], [0, 0, 1, 0], [], []>, precision = #tpu.contract_precision<fp32>} : vector<16x32xf32>, vector<32x32xf32>, vector<16x32xf32> -> vector<16x32xf32>
    %7 = arith.addf %3, %6 : vector<16x32xf32>
    %c0_6 = arith.constant 0 : index
    %c0_7 = arith.constant 0 : index
    %8 = vector.load %arg9[%c0_6, %c0_7] : memref<16x32xf32, #tpu.memory_space<vmem>>, vector<16x32xf32>
    tpu.vector_store %arg9[%c0_6, %c0_7], %7 {strides = array<i32>} : memref<16x32xf32, #tpu.memory_space<vmem>>, vector<16x32xf32>,
    %c0_i32_8 = arith.constant 0 : i32
    %9 = arith.cmpi eq, %arg2, %c0_i32_8 : i32
    %10 = arith.extui %9 : i1 to i32
    %c0_i32_9 = arith.constant 0 : i32
    %11 = arith.cmpi ne, %10, %c0_i32_9 : i32
    scf.if %11 {
      %c0_10 = arith.constant 0 : index
      %c0_11 = arith.constant 0 : index
      %12 = vector.load %arg5[%c0_10, %c0_11] : memref<16x8xf32, #tpu.memory_space<vmem>>, vector<16x8xf32>
      %c0_12 = arith.constant 0 : index
      %c0_13 = arith.constant 0 : index
      %13 = vector.load %arg6[%c0_12, %c0_13] : memref<32x8xf32, #tpu.memory_space<vmem>>, vector<32x8xf32>
      %cst_14 = arith.constant dense<0.000000e+00> : vector<16x32xf32>
      %14 = tpu.matmul %12, %13, %cst_14 {dimension_numbers = #tpu.dot_dimension_numbers<[1], [1], [0], [0], [0, 0, 1, 0], [], []>, precision = #tpu.contract_precision<fp32>} : vector<16x8xf32>, vector<32x8xf32>, vector<16x32xf32> -> vector<16x32xf32>
      %c0_15 = arith.constant 0 : index
      %c0_16 = arith.constant 0 : index
      %15 = vector.load %arg9[%c0_15, %c0_16] : memref<16x32xf32, #tpu.memory_space<vmem>>, vector<16x32xf32>
      %16 = arith.addf %15, %14 : vector<16x32xf32>
      %c0_17 = arith.constant 0 : index
      %c0_18 = arith.constant 0 : index
      %17 = vector.load %arg7[%c0_17, %c0_18] : memref<1x32xf32, #tpu.memory_space<vmem>>, vector<1x32xf32>
      %18 = vector.broadcast %17 : vector<1x32xf32> to vector<16x32xf32>
      %19 = arith.addf %16, %18 : vector<16x32xf32>
      %c0_19 = arith.constant 0 : index
      %c0_20 = arith.constant 0 : index
      %20 = vector.load %arg8[%c0_19, %c0_20] : memref<16x32xf32, #tpu.memory_space<vmem>>, vector<16x32xf32>
      tpu.vector_store %arg8[%c0_19, %c0_20], %19 {strides = array<i32>} : memref<16x32xf32, #tpu.memory_space<vmem>>, vector<16x32xf32>,
    } else {
    }
    return
  }
  func.func @transform_0(%arg0: i32, %arg1: i32, %arg2: i32) -> (i32, i32) {
    %c0_i32 = arith.constant 0 : i32
    return %arg0, %arg2 : i32, i32
  }
  func.func @transform_1(%arg0: i32, %arg1: i32, %arg2: i32) -> (i32, i32) {
    %c0_i32 = arith.constant 0 : i32
    return %arg1, %arg2 : i32, i32
  }
  func.func @transform_2(%arg0: i32, %arg1: i32, %arg2: i32) -> (i32, i32) {
    %c0_i32 = arith.constant 0 : i32
    %c0_i32_0 = arith.constant 0 : i32
    return %arg0, %c0_i32 : i32, i32
  }
  func.func @transform_3(%arg0: i32, %arg1: i32, %arg2: i32) -> (i32, i32) {
    %c0_i32 = arith.constant 0 : i32
    %c0_i32_0 = arith.constant 0 : i32
    return %arg1, %c0_i32 : i32, i32
  }
  func.func @transform_4(%arg0: i32, %arg1: i32, %arg2: i32) -> (i32, i32) {
    %c0_i32 = arith.constant 0 : i32
    %c0_i32_0 = arith.constant 0 : i32
    return %c0_i32, %arg1 : i32, i32
  }
  func.func @transform_5(%arg0: i32, %arg1: i32, %arg2: i32) -> (i32, i32) {
    %c0_i32 = arith.constant 0 : i32
    return %arg0, %arg1 : i32, i32
  }
}

</mosaic_0001>

<llo_original>
// kernel: tpu_custom_call.1
$region0: #{tpu_custom_call.1}
  #allocation0 [shape = 'u32[]', space=smem, size = 0x4, offset = 0x4, fixed_abs, tag = 'smem constant byte address 0x4 - core index']
  #allocation1 [shape = 'u32[144,128]{1,0:T(1,128)}', space=vmem, size = 0x12000, scoped, tag = 'internal scratch']
  #allocation2 [shape = 'f32[16,32]{1,0:T(8,128)}', space=vmem, size = 0x2000, scoped, tag = 'scratch operand']
  %s0 = inlined_call_operand.vmem [shape: f32[16,32], index: 0, kind: input, shape index: {}]
  %s1 = inlined_call_operand.vmem [shape: f32[32,32], index: 1, kind: input, shape index: {}]
  %s2 = inlined_call_operand.vmem [shape: f32[16,8], index: 2, kind: input, shape index: {}]
  %s3 = inlined_call_operand.vmem [shape: f32[32,8], index: 3, kind: input, shape index: {}]
  %s4 = inlined_call_operand.vmem [shape: f32[1,32], index: 4, kind: input, shape index: {}]
  %s5 = inlined_call_operand.hbm [shape: f32[16,32], index: 5, kind: output, shape index: {}]
  %s6 = sld [smem:[#allocation0]]
  $region38: #{tpu_custom_call.1} parent=0
    _
  %s8 = ssub.s32 1, %s6
  %s9 = scalar_select 0, %s8, %s6
  $region1: #{tpu_custom_call.1} parent=0
    #allocation3 [shape = 'u8[8192]{0}', space=vmem, size = 0x2000, scoped, tag = 'output window, operand 0, single buffered']
    #allocation4 [shape = 's32[1]{0}', space=sflag, size = 0x4, scoped, tag = 'scoped memory for tpu_custom_call.1']
    %10 = vsyncpa [#allocation4], 0
    // Predicated region
    $region2: #{tpu_custom_call.1} parent=1 // pred_check
      _
    $region3: #{tpu_custom_call.1} parent=1 // pred_check_branch
      %12 = sbr.rel (0) target = $region5
    $region4: #{tpu_custom_call.1} parent=1 // pred_region
      _
    $region5: #{tpu_custom_call.1} parent=1 // pred_fallthru
      _
    // Predicated region
    $region6: #{tpu_custom_call.1} parent=1 // pred_check
      _
    $region7: #{tpu_custom_call.1} parent=1 // pred_check_branch
      %14 = sbr.rel (0) target = $region9
    $region8: #{tpu_custom_call.1} parent=1 // pred_region
      _
    $region9: #{tpu_custom_call.1} parent=1 // pred_fallthru
      _
    // Predicated region
    $region10: #{tpu_custom_call.1} parent=1 // pred_check
      _
    $region11: #{tpu_custom_call.1} parent=1 // pred_check_branch
      %16 = sbr.rel (0) target = $region13
    $region12: #{tpu_custom_call.1} parent=1 // pred_region
      _
    $region13: #{tpu_custom_call.1} parent=1 // pred_fallthru
      _
    // Predicated region
    $region14: #{tpu_custom_call.1} parent=1 // pred_check
      _
    $region15: #{tpu_custom_call.1} parent=1 // pred_check_branch
      %18 = sbr.rel (0) target = $region17
    $region16: #{tpu_custom_call.1} parent=1 // pred_region
      _
    $region17: #{tpu_custom_call.1} parent=1 // pred_fallthru
      _
    // Predicated region
    $region18: #{tpu_custom_call.1} parent=1 // pred_check
      _
    $region19: #{tpu_custom_call.1} parent=1 // pred_check_branch
      %20 = sbr.rel (0) target = $region21
    $region20: #{tpu_custom_call.1} parent=1 // pred_region
      _
    $region21: #{tpu_custom_call.1} parent=1 // pred_fallthru
      _
    %p21 = scmp.eq.s32.totalorder 0, 0
    // Predicated region
    $region22: #{tpu_custom_call.1} parent=1 // pred_check
      %p22 = pneg %p21
    $region23: #{tpu_custom_call.1} parent=1 // pred_check_branch
      %24 = sbr.rel (%p22) target = $region25
    $region24: #{tpu_custom_call.1} parent=1 // pred_region
      %vm25 = vcmask 261120
      %26 = vst.msk [vmem:[#allocation2] sm:$0xff] %vm25, 0.0
      %27 = vst.msk [vmem:[#allocation2 + $0x8] sm:$0xff] %vm25, 0.0
    $region25: #{tpu_custom_call.1} parent=1 // pred_fallthru
      _
    %v28 = vld [vmem:[#allocation2] sm:$0xff]
    %v29 = vld [vmem:[#allocation2 + $0x8] sm:$0xff]
    %v30 = vld [vmem:[%s0] sm:$0xff]
    %v31 = vld [vmem:[%s0 + $0x8] sm:$0xff]
    %v32 = vld [vmem:[%s1] sm:$0xff]
    %v33 = vld [vmem:[%s1 + $0x8] sm:$0xff]
    %v34 = vld [vmem:[%s1 + $0x10] sm:$0xff]
    %v35 = vld [vmem:[%s1 + $0x18] sm:$0xff]
    %vm36 = vcmask 261120
    %v38 = vsel %vm36, %v30, 0
    %v41 = vsel %vm36, %v31, 0
    %v44 = vsel %vm36, %v32, 0
    %v47 = vsel %vm36, %v33, 0
    %v50 = vsel %vm36, %v34, 0
    %v53 = vsel %vm36, %v35, 0
    %55 = vmatprep.subr.mxu0 0.0
    %56 = vmatpush1.xpose.msra.mxu0 0.0
    %57 = vmatprep.subr.mxu0 0.0
    %58 = vmatpush1.xpose.msra.mxu0 0.0
    %59 = vmatprep.subr.mxu0 0.0
    %60 = vmatpush1.xpose.msra.mxu0 0.0
    %61 = vmatprep.subr.mxu0 0.0
    %62 = vmatpush1.xpose.msra.mxu0 0.0
    %63 = vmatprep.subr.mxu0 0.0
    %64 = vmatpush1.xpose.msra.mxu0 0.0
    %65 = vmatprep.subr.mxu0 0.0
    %66 = vmatpush1.xpose.msra.mxu0 0.0
    %67 = vmatprep.subr.mxu0 0.0
    %68 = vmatpush1.xpose.msra.mxu0 0.0
    %69 = vmatprep.subr.mxu0 0.0
    %70 = vmatpush1.xpose.msra.mxu0 0.0
    %71 = vmatprep.subr.mxu0 0.0
    %72 = vmatpush1.xpose.msra.mxu0 0.0
    %73 = vmatprep.subr.mxu0 0.0
    %74 = vmatpush1.xpose.msra.mxu0 0.0
    %75 = vmatprep.subr.mxu0 0.0
    %76 = vmatpush1.xpose.msra.mxu0 0.0
    %77 = vmatprep.subr.mxu0 0.0
    %78 = vmatpush1.xpose.msra.mxu0 0.0
    %79 = vmatprep.subr.mxu0 0.0
    %v80 = vand.u32 %v53, 4294901760
    %81 = vmatpush1.xpose.msra.mxu0 %v80
    %82 = vmatprep.subr.mxu0 0.0
    %v83 = vand.u32 %v50, 4294901760
    %84 = vmatpush1.xpose.msra.mxu0 %v83
    %85 = vmatprep.subr.mxu0 0.0
    %v86 = vand.u32 %v47, 4294901760
    %87 = vmatpush1.xpose.msra.mxu0 %v86
    %88 = vmatprep.subr.mxu0 0.0
    %v89 = vand.u32 %v44, 4294901760
    %90 = vmatpush1.xpose.msra.mxu0 %v89
    %91 = vmatprep.subr.mxu0 0.0
    %92 = vmatpush2.xpose.msra.mxu0 0.0
    %93 = vmatprep.subr.mxu0 0.0
    %94 = vmatpush2.xpose.msra.mxu0 0.0
    %95 = vmatprep.subr.mxu0 0.0
    %96 = vmatpush2.xpose.msra.mxu0 0.0
    %97 = vmatprep.subr.mxu0 0.0
    %98 = vmatpush2.xpose.msra.mxu0 0.0
    %99 = vmatprep.subr.mxu0 0.0
    %100 = vmatpush2.xpose.msra.mxu0 0.0
    %101 = vmatprep.subr.mxu0 0.0
    %102 = vmatpush2.xpose.msra.mxu0 0.0
    %103 = vmatprep.subr.mxu0 0.0
    %104 = vmatpush2.xpose.msra.mxu0 0.0
    %105 = vmatprep.subr.mxu0 0.0
    %106 = vmatpush2.xpose.msra.mxu0 0.0
    %107 = vmatprep.subr.mxu0 0.0
    %108 = vmatpush2.xpose.msra.mxu0 0.0
    %109 = vmatprep.subr.mxu0 0.0
    %110 = vmatpush2.xpose.msra.mxu0 0.0
    %111 = vmatprep.subr.mxu0 0.0
    %112 = vmatpush2.xpose.msra.mxu0 0.0
    %113 = vmatprep.subr.mxu0 0.0
    %114 = vmatpush2.xpose.msra.mxu0 0.0
    %115 = vmatprep.subr.mxu0 0.0
    %116 = vmatpush2.xpose.msra.mxu0 0.0
    %117 = vmatprep.subr.mxu0 0.0
    %118 = vmatpush2.xpose.msra.mxu0 0.0
    %119 = vmatprep.subr.mxu0 0.0
    %120 = vmatpush2.xpose.msra.mxu0 0.0
    %121 = vmatprep.subr.mxu0 0.0
    %122 = vmatpush2.xpose.msra.mxu0 0.0
    %123 = vmatprep.mubr.f32.mxu0 0.0
    %v124 = vand.u32 %v38, 4294901760
    %v125 = vsub.f32 %v38, %v124
    %v126 = vand.u32 %v125, 4294901760
    %v127 = vsub.f32 %v125, %v126
    %v128 = vand.u32 %v127, 4294901760
    %129 = vmatmul.mubr.f32.gmra.mxu0 %v128
    %v130 = vpop.f32.mrf.mxu0
    %v131 = vadd.f32 0.0, %v130
    %v132 = vpop.f32.mrf.mxu0
    %133 = vmatprep.mubr.f32.mxu0 0.0
    %v134 = vand.u32 %v41, 4294901760
    %v135 = vsub.f32 %v41, %v134
    %v136 = vand.u32 %v135, 4294901760
    %v137 = vsub.f32 %v135, %v136
    %v138 = vand.u32 %v137, 4294901760
    %139 = vmatmul.mubr.f32.gmra.mxu0 %v138
    %v140 = vpop.f32.mrf.mxu0
    %v141 = vadd.f32 0.0, %v140
    %v142 = vpop.f32.mrf.mxu0
    %143 = vdwg.mxu0
    %144 = vmatprep.subr.mxu0 0.0
    %145 = vmatpush1.xpose.msra.mxu0 0.0
    %146 = vmatprep.subr.mxu0 0.0
    %147 = vmatpush1.xpose.msra.mxu0 0.0
    %148 = vmatprep.subr.mxu0 0.0
    %149 = vmatpush1.xpose.msra.mxu0 0.0
    %150 = vmatprep.subr.mxu0 0.0
    %151 = vmatpush1.xpose.msra.mxu0 0.0
    %152 = vmatprep.subr.mxu0 0.0
    %153 = vmatpush1.xpose.msra.mxu0 0.0
    %154 = vmatprep.subr.mxu0 0.0
    %155 = vmatpush1.xpose.msra.mxu0 0.0
    %156 = vmatprep.subr.mxu0 0.0
    %157 = vmatpush1.xpose.msra.mxu0 0.0
    %158 = vmatprep.subr.mxu0 0.0
    %159 = vmatpush1.xpose.msra.mxu0 0.0
    %160 = vmatprep.subr.mxu0 0.0
    %161 = vmatpush1.xpose.msra.mxu0 0.0
    %162 = vmatprep.subr.mxu0 0.0
    %163 = vmatpush1.xpose.msra.mxu0 0.0
    %164 = vmatprep.subr.mxu0 0.0
    %165 = vmatpush1.xpose.msra.mxu0 0.0
    %166 = vmatprep.subr.mxu0 0.0
    %167 = vmatpush1.xpose.msra.mxu0 0.0
    %168 = vmatprep.subr.mxu0 0.0
    %v169 = vand.u32 %v53, 4294901760
    %v170 = vsub.f32 %v53, %v169
    %v171 = vand.u32 %v170, 4294901760
    %v172 = vsub.f32 %v170, %v171
    %v173 = vand.u32 %v172, 4294901760
    %174 = vmatpush1.xpose.msra.mxu0 %v173
    %175 = vmatprep.subr.mxu0 0.0
    %v176 = vand.u32 %v50, 4294901760
    %v177 = vsub.f32 %v50, %v176
    %v178 = vand.u32 %v177, 4294901760
    %v179 = vsub.f32 %v177, %v178
    %v180 = vand.u32 %v179, 4294901760
    %181 = vmatpush1.xpose.msra.mxu0 %v180
    %182 = vmatprep.subr.mxu0 0.0
    %v183 = vand.u32 %v47, 4294901760
    %v184 = vsub.f32 %v47, %v183
    %v185 = vand.u32 %v184, 4294901760
    %v186 = vsub.f32 %v184, %v185
    %v187 = vand.u32 %v186, 4294901760
    %188 = vmatpush1.xpose.msra.mxu0 %v187
    %189 = vmatprep.subr.mxu0 0.0
    %v190 = vand.u32 %v44, 4294901760
    %v191 = vsub.f32 %v44, %v190
    %v192 = vand.u32 %v191, 4294901760
    %v193 = vsub.f32 %v191, %v192
    %v194 = vand.u32 %v193, 4294901760
    %195 = vmatpush1.xpose.msra.mxu0 %v194
    %196 = vmatprep.subr.mxu0 0.0
    %197 = vmatpush2.xpose.msra.mxu0 0.0
    %198 = vmatprep.subr.mxu0 0.0
    %199 = vmatpush2.xpose.msra.mxu0 0.0
    %200 = vmatprep.subr.mxu0 0.0
    %201 = vmatpush2.xpose.msra.mxu0 0.0
    %202 = vmatprep.subr.mxu0 0.0
    %203 = vmatpush2.xpose.msra.mxu0 0.0
    %204 = vmatprep.subr.mxu0 0.0
    %205 = vmatpush2.xpose.msra.mxu0 0.0
    %206 = vmatprep.subr.mxu0 0.0
    %207 = vmatpush2.xpose.msra.mxu0 0.0
    %208 = vmatprep.subr.mxu0 0.0
    %209 = vmatpush2.xpose.msra.mxu0 0.0
    %210 = vmatprep.subr.mxu0 0.0
    %211 = vmatpush2.xpose.msra.mxu0 0.0
    %212 = vmatprep.subr.mxu0 0.0
    %213 = vmatpush2.xpose.msra.mxu0 0.0
    %214 = vmatprep.subr.mxu0 0.0
    %215 = vmatpush2.xpose.msra.mxu0 0.0
    %216 = vmatprep.subr.mxu0 0.0
    %217 = vmatpush2.xpose.msra.mxu0 0.0
    %218 = vmatprep.subr.mxu0 0.0
    %219 = vmatpush2.xpose.msra.mxu0 0.0
    %220 = vmatprep.subr.mxu0 0.0
    %221 = vmatpush2.xpose.msra.mxu0 0.0
    %222 = vmatprep.subr.mxu0 0.0
    %223 = vmatpush2.xpose.msra.mxu0 0.0
    %224 = vmatprep.subr.mxu0 0.0
    %225 = vmatpush2.xpose.msra.mxu0 0.0
    %226 = vmatprep.subr.mxu0 0.0
    %227 = vmatpush2.xpose.msra.mxu0 0.0
    %228 = vmatprep.mubr.f32.mxu0 0.0
    %v229 = vand.u32 %v38, 4294901760
    %230 = vmatmul.mubr.f32.gmra.mxu0 %v229
    %v231 = vpop.f32.mrf.mxu0
    %v232 = vadd.f32 %v131, %v231
    %v233 = vpop.f32.mrf.mxu0
    %234 = vmatprep.mubr.f32.mxu0 0.0
    %v235 = vand.u32 %v41, 4294901760
    %236 = vmatmul.mubr.f32.gmra.mxu0 %v235
    %v237 = vpop.f32.mrf.mxu0
    %v238 = vadd.f32 %v141, %v237
    %v239 = vpop.f32.mrf.mxu0
    %240 = vdwg.mxu0
    %241 = vmatprep.subr.mxu0 0.0
    %242 = vmatpush1.xpose.msra.mxu0 0.0
    %243 = vmatprep.subr.mxu0 0.0
    %244 = vmatpush1.xpose.msra.mxu0 0.0
    %245 = vmatprep.subr.mxu0 0.0
    %246 = vmatpush1.xpose.msra.mxu0 0.0
    %247 = vmatprep.subr.mxu0 0.0
    %248 = vmatpush1.xpose.msra.mxu0 0.0
    %249 = vmatprep.subr.mxu0 0.0
    %250 = vmatpush1.xpose.msra.mxu0 0.0
    %251 = vmatprep.subr.mxu0 0.0
    %252 = vmatpush1.xpose.msra.mxu0 0.0
    %253 = vmatprep.subr.mxu0 0.0
    %254 = vmatpush1.xpose.msra.mxu0 0.0
    %255 = vmatprep.subr.mxu0 0.0
    %256 = vmatpush1.xpose.msra.mxu0 0.0
    %257 = vmatprep.subr.mxu0 0.0
    %258 = vmatpush1.xpose.msra.mxu0 0.0
    %259 = vmatprep.subr.mxu0 0.0
    %260 = vmatpush1.xpose.msra.mxu0 0.0
    %261 = vmatprep.subr.mxu0 0.0
    %262 = vmatpush1.xpose.msra.mxu0 0.0
    %263 = vmatprep.subr.mxu0 0.0
    %264 = vmatpush1.xpose.msra.mxu0 0.0
    %265 = vmatprep.subr.mxu0 0.0
    %v266 = vand.u32 %v53, 4294901760
    %v267 = vsub.f32 %v53, %v266
    %268 = vmatpush1.xpose.msra.mxu0 %v267
    %269 = vmatprep.subr.mxu0 0.0
    %v270 = vand.u32 %v50, 4294901760
    %v271 = vsub.f32 %v50, %v270
    %272 = vmatpush1.xpose.msra.mxu0 %v271
    %273 = vmatprep.subr.mxu0 0.0
    %v274 = vand.u32 %v47, 4294901760
    %v275 = vsub.f32 %v47, %v274
    %276 = vmatpush1.xpose.msra.mxu0 %v275
    %277 = vmatprep.subr.mxu0 0.0
    %v278 = vand.u32 %v44, 4294901760
    %v279 = vsub.f32 %v44, %v278
    %280 = vmatpush1.xpose.msra.mxu0 %v279
    %281 = vmatprep.subr.mxu0 0.0
    %282 = vmatpush2.xpose.msra.mxu0 0.0
    %283 = vmatprep.subr.mxu0 0.0
    %284 = vmatpush2.xpose.msra.mxu0 0.0
    %285 = vmatprep.subr.mxu0 0.0
    %286 = vmatpush2.xpose.msra.mxu0 0.0
    %287 = vmatprep.subr.mxu0 0.0
    %288 = vmatpush2.xpose.msra.mxu0 0.0
    %289 = vmatprep.subr.mxu0 0.0
    %290 = vmatpush2.xpose.msra.mxu0 0.0
    %291 = vmatprep.subr.mxu0 0.0
    %292 = vmatpush2.xpose.msra.mxu0 0.0
    %293 = vmatprep.subr.mxu0 0.0
    %294 = vmatpush2.xpose.msra.mxu0 0.0
    %295 = vmatprep.subr.mxu0 0.0
    %296 = vmatpush2.xpose.msra.mxu0 0.0
    %297 = vmatprep.subr.mxu0 0.0
    %298 = vmatpush2.xpose.msra.mxu0 0.0
    %299 = vmatprep.subr.mxu0 0.0
    %300 = vmatpush2.xpose.msra.mxu0 0.0
    %301 = vmatprep.subr.mxu0 0.0
    %302 = vmatpush2.xpose.msra.mxu0 0.0
    %303 = vmatprep.subr.mxu0 0.0
    %304 = vmatpush2.xpose.msra.mxu0 0.0
    %305 = vmatprep.subr.mxu0 0.0
    %306 = vmatpush2.xpose.msra.mxu0 0.0
    %307 = vmatprep.subr.mxu0 0.0
    %308 = vmatpush2.xpose.msra.mxu0 0.0
    %309 = vmatprep.subr.mxu0 0.0
    %310 = vmatpush2.xpose.msra.mxu0 0.0
    %311 = vmatprep.subr.mxu0 0.0
    %312 = vmatpush2.xpose.msra.mxu0 0.0
    %313 = vmatprep.mubr.f32.mxu0 0.0
    %v314 = vand.u32 %v38, 4294901760
    %v315 = vsub.f32 %v38, %v314
    %316 = vmatmul.mubr.f32.gmra.mxu0 %v315
    %v317 = vpop.f32.mrf.mxu0
    %v318 = vadd.f32 %v232, %v317
    %v319 = vpop.f32.mrf.mxu0
    %320 = vmatprep.mubr.f32.mxu0 0.0
    %v321 = vand.u32 %v41, 4294901760
    %v322 = vsub.f32 %v41, %v321
    %323 = vmatmul.mubr.f32.gmra.mxu0 %v322
    %v324 = vpop.f32.mrf.mxu0
    %v325 = vadd.f32 %v238, %v324
    %v326 = vpop.f32.mrf.mxu0
    %327 = vdwg.mxu0
    %328 = vmatprep.subr.mxu0 0.0
    %329 = vmatpush1.xpose.msra.mxu0 0.0
    %330 = vmatprep.subr.mxu0 0.0
    %331 = vmatpush1.xpose.msra.mxu0 0.0
    %332 = vmatprep.subr.mxu0 0.0
    %333 = vmatpush1.xpose.msra.mxu0 0.0
    %334 = vmatprep.subr.mxu0 0.0
    %335 = vmatpush1.xpose.msra.mxu0 0.0
    %336 = vmatprep.subr.mxu0 0.0
    %337 = vmatpush1.xpose.msra.mxu0 0.0
    %338 = vmatprep.subr.mxu0 0.0
    %339 = vmatpush1.xpose.msra.mxu0 0.0
    %340 = vmatprep.subr.mxu0 0.0
    %341 = vmatpush1.xpose.msra.mxu0 0.0
    %342 = vmatprep.subr.mxu0 0.0
    %343 = vmatpush1.xpose.msra.mxu0 0.0
    %344 = vmatprep.subr.mxu0 0.0
    %345 = vmatpush1.xpose.msra.mxu0 0.0
    %346 = vmatprep.subr.mxu0 0.0
    %347 = vmatpush1.xpose.msra.mxu0 0.0
    %348 = vmatprep.subr.mxu0 0.0
    %349 = vmatpush1.xpose.msra.mxu0 0.0
    %350 = vmatprep.subr.mxu0 0.0
    %351 = vmatpush1.xpose.msra.mxu0 0.0
    %352 = vmatprep.subr.mxu0 0.0
    %v353 = vand.u32 %v53, 4294901760
    %354 = vmatpush1.xpose.msra.mxu0 %v353
    %355 = vmatprep.subr.mxu0 0.0
    %v356 = vand.u32 %v50, 4294901760
    %357 = vmatpush1.xpose.msra.mxu0 %v356
    %358 = vmatprep.subr.mxu0 0.0
    %v359 = vand.u32 %v47, 4294901760
    %360 = vmatpush1.xpose.msra.mxu0 %v359
    %361 = vmatprep.subr.mxu0 0.0
    %v362 = vand.u32 %v44, 4294901760
    %363 = vmatpush1.xpose.msra.mxu0 %v362
    %364 = vmatprep.subr.mxu0 0.0
    %365 = vmatpush2.xpose.msra.mxu0 0.0
    %366 = vmatprep.subr.mxu0 0.0
    %367 = vmatpush2.xpose.msra.mxu0 0.0
    %368 = vmatprep.subr.mxu0 0.0
    %369 = vmatpush2.xpose.msra.mxu0 0.0
    %370 = vmatprep.subr.mxu0 0.0
    %371 = vmatpush2.xpose.msra.mxu0 0.0
    %372 = vmatprep.subr.mxu0 0.0
    %373 = vmatpush2.xpose.msra.mxu0 0.0
    %374 = vmatprep.subr.mxu0 0.0
    %375 = vmatpush2.xpose.msra.mxu0 0.0
    %376 = vmatprep.subr.mxu0 0.0
    %377 = vmatpush2.xpose.msra.mxu0 0.0
    %378 = vmatprep.subr.mxu0 0.0
    %379 = vmatpush2.xpose.msra.mxu0 0.0
    %380 = vmatprep.subr.mxu0 0.0
    %381 = vmatpush2.xpose.msra.mxu0 0.0
    %382 = vmatprep.subr.mxu0 0.0
    %383 = vmatpush2.xpose.msra.mxu0 0.0
    %384 = vmatprep.subr.mxu0 0.0
    %385 = vmatpush2.xpose.msra.mxu0 0.0
    %386 = vmatprep.subr.mxu0 0.0
    %387 = vmatpush2.xpose.msra.mxu0 0.0
    %388 = vmatprep.subr.mxu0 0.0
    %389 = vmatpush2.xpose.msra.mxu0 0.0
    %390 = vmatprep.subr.mxu0 0.0
    %391 = vmatpush2.xpose.msra.mxu0 0.0
    %392 = vmatprep.subr.mxu0 0.0
    %393 = vmatpush2.xpose.msra.mxu0 0.0
    %394 = vmatprep.subr.mxu0 0.0
    %395 = vmatpush2.xpose.msra.mxu0 0.0
    %396 = vmatprep.mubr.f32.mxu0 0.0
    %v397 = vand.u32 %v38, 4294901760
    %v398 = vsub.f32 %v38, %v397
    %v399 = vand.u32 %v398, 4294901760
    %400 = vmatmul.mubr.f32.gmra.mxu0 %v399
    %v401 = vpop.f32.mrf.mxu0
    %v402 = vadd.f32 %v318, %v401
    %v403 = vpop.f32.mrf.mxu0
    %404 = vmatprep.mubr.f32.mxu0 0.0
    %v405 = vand.u32 %v41, 4294901760
    %v406 = vsub.f32 %v41, %v405
    %v407 = vand.u32 %v406, 4294901760
    %408 = vmatmul.mubr.f32.gmra.mxu0 %v407
    %v409 = vpop.f32.mrf.mxu0
    %v410 = vadd.f32 %v325, %v409
    %v411 = vpop.f32.mrf.mxu0
    %412 = vdwg.mxu0
    %413 = vmatprep.subr.mxu0 0.0
    %414 = vmatpush1.xpose.msra.mxu0 0.0
    %415 = vmatprep.subr.mxu0 0.0
    %416 = vmatpush1.xpose.msra.mxu0 0.0
    %417 = vmatprep.subr.mxu0 0.0
    %418 = vmatpush1.xpose.msra.mxu0 0.0
    %419 = vmatprep.subr.mxu0 0.0
    %420 = vmatpush1.xpose.msra.mxu0 0.0
    %421 = vmatprep.subr.mxu0 0.0
    %422 = vmatpush1.xpose.msra.mxu0 0.0
    %423 = vmatprep.subr.mxu0 0.0
    %424 = vmatpush1.xpose.msra.mxu0 0.0
    %425 = vmatprep.subr.mxu0 0.0
    %426 = vmatpush1.xpose.msra.mxu0 0.0
    %427 = vmatprep.subr.mxu0 0.0
    %428 = vmatpush1.xpose.msra.mxu0 0.0
    %429 = vmatprep.subr.mxu0 0.0
    %430 = vmatpush1.xpose.msra.mxu0 0.0
    %431 = vmatprep.subr.mxu0 0.0
    %432 = vmatpush1.xpose.msra.mxu0 0.0
    %433 = vmatprep.subr.mxu0 0.0
    %434 = vmatpush1.xpose.msra.mxu0 0.0
    %435 = vmatprep.subr.mxu0 0.0
    %436 = vmatpush1.xpose.msra.mxu0 0.0
    %437 = vmatprep.subr.mxu0 0.0
    %v438 = vand.u32 %v53, 4294901760
    %v439 = vsub.f32 %v53, %v438
    %v440 = vand.u32 %v439, 4294901760
    %441 = vmatpush1.xpose.msra.mxu0 %v440
    %442 = vmatprep.subr.mxu0 0.0
    %v443 = vand.u32 %v50, 4294901760
    %v444 = vsub.f32 %v50, %v443
    %v445 = vand.u32 %v444, 4294901760
    %446 = vmatpush1.xpose.msra.mxu0 %v445
    %447 = vmatprep.subr.mxu0 0.0
    %v448 = vand.u32 %v47, 4294901760
    %v449 = vsub.f32 %v47, %v448
    %v450 = vand.u32 %v449, 4294901760
    %451 = vmatpush1.xpose.msra.mxu0 %v450
    %452 = vmatprep.subr.mxu0 0.0
    %v453 = vand.u32 %v44, 4294901760
    %v454 = vsub.f32 %v44, %v453
    %v455 = vand.u32 %v454, 4294901760
    %456 = vmatpush1.xpose.msra.mxu0 %v455
    %457 = vmatprep.subr.mxu0 0.0
    %458 = vmatpush2.xpose.msra.mxu0 0.0
    %459 = vmatprep.subr.mxu0 0.0
    %460 = vmatpush2.xpose.msra.mxu0 0.0
    %461 = vmatprep.subr.mxu0 0.0
    %462 = vmatpush2.xpose.msra.mxu0 0.0
    %463 = vmatprep.subr.mxu0 0.0
    %464 = vmatpush2.xpose.msra.mxu0 0.0
    %465 = vmatprep.subr.mxu0 0.0
    %466 = vmatpush2.xpose.msra.mxu0 0.0
    %467 = vmatprep.subr.mxu0 0.0
    %468 = vmatpush2.xpose.msra.mxu0 0.0
    %469 = vmatprep.subr.mxu0 0.0
    %470 = vmatpush2.xpose.msra.mxu0 0.0
    %471 = vmatprep.subr.mxu0 0.0
    %472 = vmatpush2.xpose.msra.mxu0 0.0
    %473 = vmatprep.subr.mxu0 0.0
    %474 = vmatpush2.xpose.msra.mxu0 0.0
    %475 = vmatprep.subr.mxu0 0.0
    %476 = vmatpush2.xpose.msra.mxu0 0.0
    %477 = vmatprep.subr.mxu0 0.0
    %478 = vmatpush2.xpose.msra.mxu0 0.0
    %479 = vmatprep.subr.mxu0 0.0
    %480 = vmatpush2.xpose.msra.mxu0 0.0
    %481 = vmatprep.subr.mxu0 0.0
    %482 = vmatpush2.xpose.msra.mxu0 0.0
    %483 = vmatprep.subr.mxu0 0.0
    %484 = vmatpush2.xpose.msra.mxu0 0.0
    %485 = vmatprep.subr.mxu0 0.0
    %486 = vmatpush2.xpose.msra.mxu0 0.0
    %487 = vmatprep.subr.mxu0 0.0
    %488 = vmatpush2.xpose.msra.mxu0 0.0
    %489 = vmatprep.mubr.f32.mxu0 0.0
    %v490 = vand.u32 %v38, 4294901760
    %491 = vmatmul.mubr.f32.gmra.mxu0 %v490
    %v492 = vpop.f32.mrf.mxu0
    %v493 = vadd.f32 %v402, %v492
    %v494 = vpop.f32.mrf.mxu0
    %495 = vmatprep.mubr.f32.mxu0 0.0
    %v496 = vand.u32 %v41, 4294901760
    %497 = vmatmul.mubr.f32.gmra.mxu0 %v496
    %v498 = vpop.f32.mrf.mxu0
    %v499 = vadd.f32 %v410, %v498
    %v500 = vpop.f32.mrf.mxu0
    %501 = vdwg.mxu0
    %502 = vmatprep.subr.mxu0 0.0
    %503 = vmatpush1.xpose.msra.mxu0 0.0
    %504 = vmatprep.subr.mxu0 0.0
    %505 = vmatpush1.xpose.msra.mxu0 0.0
    %506 = vmatprep.subr.mxu0 0.0
    %507 = vmatpush1.xpose.msra.mxu0 0.0
    %508 = vmatprep.subr.mxu0 0.0
    %509 = vmatpush1.xpose.msra.mxu0 0.0
    %510 = vmatprep.subr.mxu0 0.0
    %511 = vmatpush1.xpose.msra.mxu0 0.0
    %512 = vmatprep.subr.mxu0 0.0
    %513 = vmatpush1.xpose.msra.mxu0 0.0
    %514 = vmatprep.subr.mxu0 0.0
    %515 = vmatpush1.xpose.msra.mxu0 0.0
    %516 = vmatprep.subr.mxu0 0.0
    %517 = vmatpush1.xpose.msra.mxu0 0.0
    %518 = vmatprep.subr.mxu0 0.0
    %519 = vmatpush1.xpose.msra.mxu0 0.0
    %520 = vmatprep.subr.mxu0 0.0
    %521 = vmatpush1.xpose.msra.mxu0 0.0
    %522 = vmatprep.subr.mxu0 0.0
    %523 = vmatpush1.xpose.msra.mxu0 0.0
    %524 = vmatprep.subr.mxu0 0.0
    %525 = vmatpush1.xpose.msra.mxu0 0.0
    %526 = vmatprep.subr.mxu0 0.0
    %v527 = vand.u32 %v53, 4294901760
    %528 = vmatpush1.xpose.msra.mxu0 %v527
    %529 = vmatprep.subr.mxu0 0.0
    %v530 = vand.u32 %v50, 4294901760
    %531 = vmatpush1.xpose.msra.mxu0 %v530
    %532 = vmatprep.subr.mxu0 0.0
    %v533 = vand.u32 %v47, 4294901760
    %534 = vmatpush1.xpose.msra.mxu0 %v533
    %535 = vmatprep.subr.mxu0 0.0
    %v536 = vand.u32 %v44, 4294901760
    %537 = vmatpush1.xpose.msra.mxu0 %v536
    %538 = vmatprep.subr.mxu0 0.0
    %539 = vmatpush2.xpose.msra.mxu0 0.0
    %540 = vmatprep.subr.mxu0 0.0
    %541 = vmatpush2.xpose.msra.mxu0 0.0
    %542 = vmatprep.subr.mxu0 0.0
    %543 = vmatpush2.xpose.msra.mxu0 0.0
    %544 = vmatprep.subr.mxu0 0.0
    %545 = vmatpush2.xpose.msra.mxu0 0.0
    %546 = vmatprep.subr.mxu0 0.0
    %547 = vmatpush2.xpose.msra.mxu0 0.0
    %548 = vmatprep.subr.mxu0 0.0
    %549 = vmatpush2.xpose.msra.mxu0 0.0
    %550 = vmatprep.subr.mxu0 0.0
    %551 = vmatpush2.xpose.msra.mxu0 0.0
    %552 = vmatprep.subr.mxu0 0.0
    %553 = vmatpush2.xpose.msra.mxu0 0.0
    %554 = vmatprep.subr.mxu0 0.0
    %555 = vmatpush2.xpose.msra.mxu0 0.0
    %556 = vmatprep.subr.mxu0 0.0
    %557 = vmatpush2.xpose.msra.mxu0 0.0
    %558 = vmatprep.subr.mxu0 0.0
    %559 = vmatpush2.xpose.msra.mxu0 0.0
    %560 = vmatprep.subr.mxu0 0.0
    %561 = vmatpush2.xpose.msra.mxu0 0.0
    %562 = vmatprep.subr.mxu0 0.0
    %563 = vmatpush2.xpose.msra.mxu0 0.0
    %564 = vmatprep.subr.mxu0 0.0
    %565 = vmatpush2.xpose.msra.mxu0 0.0
    %566 = vmatprep.subr.mxu0 0.0
    %567 = vmatpush2.xpose.msra.mxu0 0.0
    %568 = vmatprep.subr.mxu0 0.0
    %569 = vmatpush2.xpose.msra.mxu0 0.0
    %570 = vmatprep.mubr.f32.mxu0 0.0
    %v571 = vand.u32 %v38, 4294901760
    %572 = vmatmul.mubr.f32.gmra.mxu0 %v571
    %v573 = vpop.f32.mrf.mxu0
    %v574 = vadd.f32 %v493, %v573
    %v575 = vpop.f32.mrf.mxu0
    %576 = vmatprep.mubr.f32.mxu0 0.0
    %v577 = vand.u32 %v41, 4294901760
    %578 = vmatmul.mubr.f32.gmra.mxu0 %v577
    %v579 = vpop.f32.mrf.mxu0
    %v580 = vadd.f32 %v499, %v579
    %v581 = vpop.f32.mrf.mxu0
    %582 = vdwg.mxu0
    %v583 = vadd.f32 %v28, %v574
    %v584 = vadd.f32 %v29, %v580
    %585 = vst.msk [vmem:[#allocation2] sm:$0xff] %vm36, %v583
    %586 = vst.msk [vmem:[#allocation2 + $0x8] sm:$0xff] %vm36, %v584
    // Predicated region
    $region26: #{tpu_custom_call.1} parent=1 // pred_check
      %p587 = pneg %p21
    $region27: #{tpu_custom_call.1} parent=1 // pred_check_branch
      %589 = sbr.rel (%p587) target = $region29
    $region28: #{tpu_custom_call.1} parent=1 // pred_region
      %v590 = vld [vmem:[%s2] sm:$0xff]
      %v591 = vld [vmem:[%s2 + $0x8] sm:$0xff]
      %v592 = vld [vmem:[%s3] sm:$0xff]
      %v593 = vld [vmem:[%s3 + $0x8] sm:$0xff]
      %v594 = vld [vmem:[%s3 + $0x10] sm:$0xff]
      %v595 = vld [vmem:[%s3 + $0x18] sm:$0xff]
      %vm596 = vcmask 64512
      %v598 = vsel %vm596, %v590, 0
      %v601 = vsel %vm596, %v591, 0
      %v604 = vsel %vm596, %v592, 0
      %v607 = vsel %vm596, %v593, 0
      %v610 = vsel %vm596, %v594, 0
      %v613 = vsel %vm596, %v595, 0
      %615 = vmatprep.subr.mxu0 0.0
      %616 = vmatpush1.xpose.msra.mxu0 0.0
      %617 = vmatprep.subr.mxu0 0.0
      %618 = vmatpush1.xpose.msra.mxu0 0.0
      %619 = vmatprep.subr.mxu0 0.0
      %620 = vmatpush1.xpose.msra.mxu0 0.0
      %621 = vmatprep.subr.mxu0 0.0
      %622 = vmatpush1.xpose.msra.mxu0 0.0
      %623 = vmatprep.subr.mxu0 0.0
      %624 = vmatpush1.xpose.msra.mxu0 0.0
      %625 = vmatprep.subr.mxu0 0.0
      %626 = vmatpush1.xpose.msra.mxu0 0.0
      %627 = vmatprep.subr.mxu0 0.0
      %628 = vmatpush1.xpose.msra.mxu0 0.0
      %629 = vmatprep.subr.mxu0 0.0
      %630 = vmatpush1.xpose.msra.mxu0 0.0
      %631 = vmatprep.subr.mxu0 0.0
      %632 = vmatpush1.xpose.msra.mxu0 0.0
      %633 = vmatprep.subr.mxu0 0.0
      %634 = vmatpush1.xpose.msra.mxu0 0.0
      %635 = vmatprep.subr.mxu0 0.0
      %636 = vmatpush1.xpose.msra.mxu0 0.0
      %637 = vmatprep.subr.mxu0 0.0
      %638 = vmatpush1.xpose.msra.mxu0 0.0
      %639 = vmatprep.subr.mxu0 0.0
      %v640 = vand.u32 %v613, 4294901760
      %641 = vmatpush1.xpose.msra.mxu0 %v640
      %642 = vmatprep.subr.mxu0 0.0
      %v643 = vand.u32 %v610, 4294901760
      %644 = vmatpush1.xpose.msra.mxu0 %v643
      %645 = vmatprep.subr.mxu0 0.0
      %v646 = vand.u32 %v607, 4294901760
      %647 = vmatpush1.xpose.msra.mxu0 %v646
      %648 = vmatprep.subr.mxu0 0.0
      %v649 = vand.u32 %v604, 4294901760
      %650 = vmatpush1.xpose.msra.mxu0 %v649
      %651 = vmatprep.subr.mxu0 0.0
      %652 = vmatpush2.xpose.msra.mxu0 0.0
      %653 = vmatprep.subr.mxu0 0.0
      %654 = vmatpush2.xpose.msra.mxu0 0.0
      %655 = vmatprep.subr.mxu0 0.0
      %656 = vmatpush2.xpose.msra.mxu0 0.0
      %657 = vmatprep.subr.mxu0 0.0
      %658 = vmatpush2.xpose.msra.mxu0 0.0
      %659 = vmatprep.subr.mxu0 0.0
      %660 = vmatpush2.xpose.msra.mxu0 0.0
      %661 = vmatprep.subr.mxu0 0.0
      %662 = vmatpush2.xpose.msra.mxu0 0.0
      %663 = vmatprep.subr.mxu0 0.0
      %664 = vmatpush2.xpose.msra.mxu0 0.0
      %665 = vmatprep.subr.mxu0 0.0
      %666 = vmatpush2.xpose.msra.mxu0 0.0
      %667 = vmatprep.subr.mxu0 0.0
      %668 = vmatpush2.xpose.msra.mxu0 0.0
      %669 = vmatprep.subr.mxu0 0.0
      %670 = vmatpush2.xpose.msra.mxu0 0.0
      %671 = vmatprep.subr.mxu0 0.0
      %672 = vmatpush2.xpose.msra.mxu0 0.0
      %673 = vmatprep.subr.mxu0 0.0
      %674 = vmatpush2.xpose.msra.mxu0 0.0
      %675 = vmatprep.subr.mxu0 0.0
      %676 = vmatpush2.xpose.msra.mxu0 0.0
      %677 = vmatprep.subr.mxu0 0.0
      %678 = vmatpush2.xpose.msra.mxu0 0.0
      %679 = vmatprep.subr.mxu0 0.0
      %680 = vmatpush2.xpose.msra.mxu0 0.0
      %681 = vmatprep.subr.mxu0 0.0
      %682 = vmatpush2.xpose.msra.mxu0 0.0
      %683 = vmatprep.mubr.f32.mxu0 0.0
      %v684 = vand.u32 %v598, 4294901760
      %v685 = vsub.f32 %v598, %v684
      %v686 = vand.u32 %v685, 4294901760
      %v687 = vsub.f32 %v685, %v686
      %v688 = vand.u32 %v687, 4294901760
      %689 = vmatmul.mubr.f32.gmra.mxu0 %v688
      %v690 = vpop.f32.mrf.mxu0
      %v691 = vadd.f32 0.0, %v690
      %v692 = vpop.f32.mrf.mxu0
      %693 = vmatprep.mubr.f32.mxu0 0.0
      %v694 = vand.u32 %v601, 4294901760
      %v695 = vsub.f32 %v601, %v694
      %v696 = vand.u32 %v695, 4294901760
      %v697 = vsub.f32 %v695, %v696
      %v698 = vand.u32 %v697, 4294901760
      %699 = vmatmul.mubr.f32.gmra.mxu0 %v698
      %v700 = vpop.f32.mrf.mxu0
      %v701 = vadd.f32 0.0, %v700
      %v702 = vpop.f32.mrf.mxu0
      %703 = vdwg.mxu0
      %704 = vmatprep.subr.mxu0 0.0
      %705 = vmatpush1.xpose.msra.mxu0 0.0
      %706 = vmatprep.subr.mxu0 0.0
      %707 = vmatpush1.xpose.msra.mxu0 0.0
      %708 = vmatprep.subr.mxu0 0.0
      %709 = vmatpush1.xpose.msra.mxu0 0.0
      %710 = vmatprep.subr.mxu0 0.0
      %711 = vmatpush1.xpose.msra.mxu0 0.0
      %712 = vmatprep.subr.mxu0 0.0
      %713 = vmatpush1.xpose.msra.mxu0 0.0
      %714 = vmatprep.subr.mxu0 0.0
      %715 = vmatpush1.xpose.msra.mxu0 0.0
      %716 = vmatprep.subr.mxu0 0.0
      %717 = vmatpush1.xpose.msra.mxu0 0.0
      %718 = vmatprep.subr.mxu0 0.0
      %719 = vmatpush1.xpose.msra.mxu0 0.0
      %720 = vmatprep.subr.mxu0 0.0
      %721 = vmatpush1.xpose.msra.mxu0 0.0
      %722 = vmatprep.subr.mxu0 0.0
      %723 = vmatpush1.xpose.msra.mxu0 0.0
      %724 = vmatprep.subr.mxu0 0.0
      %725 = vmatpush1.xpose.msra.mxu0 0.0
      %726 = vmatprep.subr.mxu0 0.0
      %727 = vmatpush1.xpose.msra.mxu0 0.0
      %728 = vmatprep.subr.mxu0 0.0
      %v729 = vand.u32 %v613, 4294901760
      %v730 = vsub.f32 %v613, %v729
      %v731 = vand.u32 %v730, 4294901760
      %v732 = vsub.f32 %v730, %v731
      %v733 = vand.u32 %v732, 4294901760
      %734 = vmatpush1.xpose.msra.mxu0 %v733
      %735 = vmatprep.subr.mxu0 0.0
      %v736 = vand.u32 %v610, 4294901760
      %v737 = vsub.f32 %v610, %v736
      %v738 = vand.u32 %v737, 4294901760
      %v739 = vsub.f32 %v737, %v738
      %v740 = vand.u32 %v739, 4294901760
      %741 = vmatpush1.xpose.msra.mxu0 %v740
      %742 = vmatprep.subr.mxu0 0.0
      %v743 = vand.u32 %v607, 4294901760
      %v744 = vsub.f32 %v607, %v743
      %v745 = vand.u32 %v744, 4294901760
      %v746 = vsub.f32 %v744, %v745
      %v747 = vand.u32 %v746, 4294901760
      %748 = vmatpush1.xpose.msra.mxu0 %v747
      %749 = vmatprep.subr.mxu0 0.0
      %v750 = vand.u32 %v604, 4294901760
      %v751 = vsub.f32 %v604, %v750
      %v752 = vand.u32 %v751, 4294901760
      %v753 = vsub.f32 %v751, %v752
      %v754 = vand.u32 %v753, 4294901760
      %755 = vmatpush1.xpose.msra.mxu0 %v754
      %756 = vmatprep.subr.mxu0 0.0
      %757 = vmatpush2.xpose.msra.mxu0 0.0
      %758 = vmatprep.subr.mxu0 0.0
      %759 = vmatpush2.xpose.msra.mxu0 0.0
      %760 = vmatprep.subr.mxu0 0.0
      %761 = vmatpush2.xpose.msra.mxu0 0.0
      %762 = vmatprep.subr.mxu0 0.0
      %763 = vmatpush2.xpose.msra.mxu0 0.0
      %764 = vmatprep.subr.mxu0 0.0
      %765 = vmatpush2.xpose.msra.mxu0 0.0
      %766 = vmatprep.subr.mxu0 0.0
      %767 = vmatpush2.xpose.msra.mxu0 0.0
      %768 = vmatprep.subr.mxu0 0.0
      %769 = vmatpush2.xpose.msra.mxu0 0.0
      %770 = vmatprep.subr.mxu0 0.0
      %771 = vmatpush2.xpose.msra.mxu0 0.0
      %772 = vmatprep.subr.mxu0 0.0
      %773 = vmatpush2.xpose.msra.mxu0 0.0
      %774 = vmatprep.subr.mxu0 0.0
      %775 = vmatpush2.xpose.msra.mxu0 0.0
      %776 = vmatprep.subr.mxu0 0.0
      %777 = vmatpush2.xpose.msra.mxu0 0.0
      %778 = vmatprep.subr.mxu0 0.0
      %779 = vmatpush2.xpose.msra.mxu0 0.0
      %780 = vmatprep.subr.mxu0 0.0
      %781 = vmatpush2.xpose.msra.mxu0 0.0
      %782 = vmatprep.subr.mxu0 0.0
      %783 = vmatpush2.xpose.msra.mxu0 0.0
      %784 = vmatprep.subr.mxu0 0.0
      %785 = vmatpush2.xpose.msra.mxu0 0.0
      %786 = vmatprep.subr.mxu0 0.0
      %787 = vmatpush2.xpose.msra.mxu0 0.0
      %788 = vmatprep.mubr.f32.mxu0 0.0
      %v789 = vand.u32 %v598, 4294901760
      %790 = vmatmul.mubr.f32.gmra.mxu0 %v789
      %v791 = vpop.f32.mrf.mxu0
      %v792 = vadd.f32 %v691, %v791
      %v793 = vpop.f32.mrf.mxu0
      %794 = vmatprep.mubr.f32.mxu0 0.0
      %v795 = vand.u32 %v601, 4294901760
      %796 = vmatmul.mubr.f32.gmra.mxu0 %v795
      %v797 = vpop.f32.mrf.mxu0
      %v798 = vadd.f32 %v701, %v797
      %v799 = vpop.f32.mrf.mxu0
      %800 = vdwg.mxu0
      %801 = vmatprep.subr.mxu0 0.0
      %802 = vmatpush1.xpose.msra.mxu0 0.0
      %803 = vmatprep.subr.mxu0 0.0
      %804 = vmatpush1.xpose.msra.mxu0 0.0
      %805 = vmatprep.subr.mxu0 0.0
      %806 = vmatpush1.xpose.msra.mxu0 0.0
      %807 = vmatprep.subr.mxu0 0.0
      %808 = vmatpush1.xpose.msra.mxu0 0.0
      %809 = vmatprep.subr.mxu0 0.0
      %810 = vmatpush1.xpose.msra.mxu0 0.0
      %811 = vmatprep.subr.mxu0 0.0
      %812 = vmatpush1.xpose.msra.mxu0 0.0
      %813 = vmatprep.subr.mxu0 0.0
      %814 = vmatpush1.xpose.msra.mxu0 0.0
      %815 = vmatprep.subr.mxu0 0.0
      %816 = vmatpush1.xpose.msra.mxu0 0.0
      %817 = vmatprep.subr.mxu0 0.0
      %818 = vmatpush1.xpose.msra.mxu0 0.0
      %819 = vmatprep.subr.mxu0 0.0
      %820 = vmatpush1.xpose.msra.mxu0 0.0
      %821 = vmatprep.subr.mxu0 0.0
      %822 = vmatpush1.xpose.msra.mxu0 0.0
      %823 = vmatprep.subr.mxu0 0.0
      %824 = vmatpush1.xpose.msra.mxu0 0.0
      %825 = vmatprep.subr.mxu0 0.0
      %v826 = vand.u32 %v613, 4294901760
      %v827 = vsub.f32 %v613, %v826
      %828 = vmatpush1.xpose.msra.mxu0 %v827
      %829 = vmatprep.subr.mxu0 0.0
      %v830 = vand.u32 %v610, 4294901760
      %v831 = vsub.f32 %v610, %v830
      %832 = vmatpush1.xpose.msra.mxu0 %v831
      %833 = vmatprep.subr.mxu0 0.0
      %v834 = vand.u32 %v607, 4294901760
      %v835 = vsub.f32 %v607, %v834
      %836 = vmatpush1.xpose.msra.mxu0 %v835
      %837 = vmatprep.subr.mxu0 0.0
      %v838 = vand.u32 %v604, 4294901760
      %v839 = vsub.f32 %v604, %v838
      %840 = vmatpush1.xpose.msra.mxu0 %v839
      %841 = vmatprep.subr.mxu0 0.0
      %842 = vmatpush2.xpose.msra.mxu0 0.0
      %843 = vmatprep.subr.mxu0 0.0
      %844 = vmatpush2.xpose.msra.mxu0 0.0
      %845 = vmatprep.subr.mxu0 0.0
      %846 = vmatpush2.xpose.msra.mxu0 0.0
      %847 = vmatprep.subr.mxu0 0.0
      %848 = vmatpush2.xpose.msra.mxu0 0.0
      %849 = vmatprep.subr.mxu0 0.0
      %850 = vmatpush2.xpose.msra.mxu0 0.0
      %851 = vmatprep.subr.mxu0 0.0
      %852 = vmatpush2.xpose.msra.mxu0 0.0
      %853 = vmatprep.subr.mxu0 0.0
      %854 = vmatpush2.xpose.msra.mxu0 0.0
      %855 = vmatprep.subr.mxu0 0.0
      %856 = vmatpush2.xpose.msra.mxu0 0.0
      %857 = vmatprep.subr.mxu0 0.0
      %858 = vmatpush2.xpose.msra.mxu0 0.0
      %859 = vmatprep.subr.mxu0 0.0
      %860 = vmatpush2.xpose.msra.mxu0 0.0
      %861 = vmatprep.subr.mxu0 0.0
      %862 = vmatpush2.xpose.msra.mxu0 0.0
      %863 = vmatprep.subr.mxu0 0.0
      %864 = vmatpush2.xpose.msra.mxu0 0.0
      %865 = vmatprep.subr.mxu0 0.0
      %866 = vmatpush2.xpose.msra.mxu0 0.0
      %867 = vmatprep.subr.mxu0 0.0
      %868 = vmatpush2.xpose.msra.mxu0 0.0
      %869 = vmatprep.subr.mxu0 0.0
      %870 = vmatpush2.xpose.msra.mxu0 0.0
      %871 = vmatprep.subr.mxu0 0.0
      %872 = vmatpush2.xpose.msra.mxu0 0.0
      %873 = vmatprep.mubr.f32.mxu0 0.0
      %v874 = vand.u32 %v598, 4294901760
      %v875 = vsub.f32 %v598, %v874
      %876 = vmatmul.mubr.f32.gmra.mxu0 %v875
      %v877 = vpop.f32.mrf.mxu0
      %v878 = vadd.f32 %v792, %v877
      %v879 = vpop.f32.mrf.mxu0
      %880 = vmatprep.mubr.f32.mxu0 0.0
      %v881 = vand.u32 %v601, 4294901760
      %v882 = vsub.f32 %v601, %v881
      %883 = vmatmul.mubr.f32.gmra.mxu0 %v882
      %v884 = vpop.f32.mrf.mxu0
      %v885 = vadd.f32 %v798, %v884
      %v886 = vpop.f32.mrf.mxu0
      %887 = vdwg.mxu0
      %888 = vmatprep.subr.mxu0 0.0
      %889 = vmatpush1.xpose.msra.mxu0 0.0
      %890 = vmatprep.subr.mxu0 0.0
      %891 = vmatpush1.xpose.msra.mxu0 0.0
      %892 = vmatprep.subr.mxu0 0.0
      %893 = vmatpush1.xpose.msra.mxu0 0.0
      %894 = vmatprep.subr.mxu0 0.0
      %895 = vmatpush1.xpose.msra.mxu0 0.0
      %896 = vmatprep.subr.mxu0 0.0
      %897 = vmatpush1.xpose.msra.mxu0 0.0
      %898 = vmatprep.subr.mxu0 0.0
      %899 = vmatpush1.xpose.msra.mxu0 0.0
      %900 = vmatprep.subr.mxu0 0.0
      %901 = vmatpush1.xpose.msra.mxu0 0.0
      %902 = vmatprep.subr.mxu0 0.0
      %903 = vmatpush1.xpose.msra.mxu0 0.0
      %904 = vmatprep.subr.mxu0 0.0
      %905 = vmatpush1.xpose.msra.mxu0 0.0
      %906 = vmatprep.subr.mxu0 0.0
      %907 = vmatpush1.xpose.msra.mxu0 0.0
      %908 = vmatprep.subr.mxu0 0.0
      %909 = vmatpush1.xpose.msra.mxu0 0.0
      %910 = vmatprep.subr.mxu0 0.0
      %911 = vmatpush1.xpose.msra.mxu0 0.0
      %912 = vmatprep.subr.mxu0 0.0
      %v913 = vand.u32 %v613, 4294901760
      %914 = vmatpush1.xpose.msra.mxu0 %v913
      %915 = vmatprep.subr.mxu0 0.0
      %v916 = vand.u32 %v610, 4294901760
      %917 = vmatpush1.xpose.msra.mxu0 %v916
      %918 = vmatprep.subr.mxu0 0.0
      %v919 = vand.u32 %v607, 4294901760
      %920 = vmatpush1.xpose.msra.mxu0 %v919
      %921 = vmatprep.subr.mxu0 0.0
      %v922 = vand.u32 %v604, 4294901760
      %923 = vmatpush1.xpose.msra.mxu0 %v922
      %924 = vmatprep.subr.mxu0 0.0
      %925 = vmatpush2.xpose.msra.mxu0 0.0
      %926 = vmatprep.subr.mxu0 0.0
      %927 = vmatpush2.xpose.msra.mxu0 0.0
      %928 = vmatprep.subr.mxu0 0.0
      %929 = vmatpush2.xpose.msra.mxu0 0.0
      %930 = vmatprep.subr.mxu0 0.0
      %931 = vmatpush2.xpose.msra.mxu0 0.0
      %932 = vmatprep.subr.mxu0 0.0
      %933 = vmatpush2.xpose.msra.mxu0 0.0
      %934 = vmatprep.subr.mxu0 0.0
      %935 = vmatpush2.xpose.msra.mxu0 0.0
      %936 = vmatprep.subr.mxu0 0.0
      %937 = vmatpush2.xpose.msra.mxu0 0.0
      %938 = vmatprep.subr.mxu0 0.0
      %939 = vmatpush2.xpose.msra.mxu0 0.0
      %940 = vmatprep.subr.mxu0 0.0
      %941 = vmatpush2.xpose.msra.mxu0 0.0
      %942 = vmatprep.subr.mxu0 0.0
      %943 = vmatpush2.xpose.msra.mxu0 0.0
      %944 = vmatprep.subr.mxu0 0.0
      %945 = vmatpush2.xpose.msra.mxu0 0.0
      %946 = vmatprep.subr.mxu0 0.0
      %947 = vmatpush2.xpose.msra.mxu0 0.0
      %948 = vmatprep.subr.mxu0 0.0
      %949 = vmatpush2.xpose.msra.mxu0 0.0
      %950 = vmatprep.subr.mxu0 0.0
      %951 = vmatpush2.xpose.msra.mxu0 0.0
      %952 = vmatprep.subr.mxu0 0.0
      %953 = vmatpush2.xpose.msra.mxu0 0.0
      %954 = vmatprep.subr.mxu0 0.0
      %955 = vmatpush2.xpose.msra.mxu0 0.0
      %956 = vmatprep.mubr.f32.mxu0 0.0
      %v957 = vand.u32 %v598, 4294901760
      %v958 = vsub.f32 %v598, %v957
      %v959 = vand.u32 %v958, 4294901760
      %960 = vmatmul.mubr.f32.gmra.mxu0 %v959
      %v961 = vpop.f32.mrf.mxu0
      %v962 = vadd.f32 %v878, %v961
      %v963 = vpop.f32.mrf.mxu0
      %964 = vmatprep.mubr.f32.mxu0 0.0
      %v965 = vand.u32 %v601, 4294901760
      %v966 = vsub.f32 %v601, %v965
      %v967 = vand.u32 %v966, 4294901760
      %968 = vmatmul.mubr.f32.gmra.mxu0 %v967
      %v969 = vpop.f32.mrf.mxu0
      %v970 = vadd.f32 %v885, %v969
      %v971 = vpop.f32.mrf.mxu0
      %972 = vdwg.mxu0
      %973 = vmatprep.subr.mxu0 0.0
      %974 = vmatpush1.xpose.msra.mxu0 0.0
      %975 = vmatprep.subr.mxu0 0.0
      %976 = vmatpush1.xpose.msra.mxu0 0.0
      %977 = vmatprep.subr.mxu0 0.0
      %978 = vmatpush1.xpose.msra.mxu0 0.0
      %979 = vmatprep.subr.mxu0 0.0
      %980 = vmatpush1.xpose.msra.mxu0 0.0
      %981 = vmatprep.subr.mxu0 0.0
      %982 = vmatpush1.xpose.msra.mxu0 0.0
      %983 = vmatprep.subr.mxu0 0.0
      %984 = vmatpush1.xpose.msra.mxu0 0.0
      %985 = vmatprep.subr.mxu0 0.0
      %986 = vmatpush1.xpose.msra.mxu0 0.0
      %987 = vmatprep.subr.mxu0 0.0
      %988 = vmatpush1.xpose.msra.mxu0 0.0
      %989 = vmatprep.subr.mxu0 0.0
      %990 = vmatpush1.xpose.msra.mxu0 0.0
      %991 = vmatprep.subr.mxu0 0.0
      %992 = vmatpush1.xpose.msra.mxu0 0.0
      %993 = vmatprep.subr.mxu0 0.0
      %994 = vmatpush1.xpose.msra.mxu0 0.0
      %995 = vmatprep.subr.mxu0 0.0
      %996 = vmatpush1.xpose.msra.mxu0 0.0
      %997 = vmatprep.subr.mxu0 0.0
      %v998 = vand.u32 %v613, 4294901760
      %v999 = vsub.f32 %v613, %v998
      %v1000 = vand.u32 %v999, 4294901760
      %1001 = vmatpush1.xpose.msra.mxu0 %v1000
      %1002 = vmatprep.subr.mxu0 0.0
      %v1003 = vand.u32 %v610, 4294901760
      %v1004 = vsub.f32 %v610, %v1003
      %v1005 = vand.u32 %v1004, 4294901760
      %1006 = vmatpush1.xpose.msra.mxu0 %v1005
      %1007 = vmatprep.subr.mxu0 0.0
      %v1008 = vand.u32 %v607, 4294901760
      %v1009 = vsub.f32 %v607, %v1008
      %v1010 = vand.u32 %v1009, 4294901760
      %1011 = vmatpush1.xpose.msra.mxu0 %v1010
      %1012 = vmatprep.subr.mxu0 0.0
      %v1013 = vand.u32 %v604, 4294901760
      %v1014 = vsub.f32 %v604, %v1013
      %v1015 = vand.u32 %v1014, 4294901760
      %1016 = vmatpush1.xpose.msra.mxu0 %v1015
      %1017 = vmatprep.subr.mxu0 0.0
      %1018 = vmatpush2.xpose.msra.mxu0 0.0
      %1019 = vmatprep.subr.mxu0 0.0
      %1020 = vmatpush2.xpose.msra.mxu0 0.0
      %1021 = vmatprep.subr.mxu0 0.0
      %1022 = vmatpush2.xpose.msra.mxu0 0.0
      %1023 = vmatprep.subr.mxu0 0.0
      %1024 = vmatpush2.xpose.msra.mxu0 0.0
      %1025 = vmatprep.subr.mxu0 0.0
      %1026 = vmatpush2.xpose.msra.mxu0 0.0
      %1027 = vmatprep.subr.mxu0 0.0
      %1028 = vmatpush2.xpose.msra.mxu0 0.0
      %1029 = vmatprep.subr.mxu0 0.0
      %1030 = vmatpush2.xpose.msra.mxu0 0.0
      %1031 = vmatprep.subr.mxu0 0.0
      %1032 = vmatpush2.xpose.msra.mxu0 0.0
      %1033 = vmatprep.subr.mxu0 0.0
      %1034 = vmatpush2.xpose.msra.mxu0 0.0
      %1035 = vmatprep.subr.mxu0 0.0
      %1036 = vmatpush2.xpose.msra.mxu0 0.0
      %1037 = vmatprep.subr.mxu0 0.0
      %1038 = vmatpush2.xpose.msra.mxu0 0.0
      %1039 = vmatprep.subr.mxu0 0.0
      %1040 = vmatpush2.xpose.msra.mxu0 0.0
      %1041 = vmatprep.subr.mxu0 0.0
      %1042 = vmatpush2.xpose.msra.mxu0 0.0
      %1043 = vmatprep.subr.mxu0 0.0
      %1044 = vmatpush2.xpose.msra.mxu0 0.0
      %1045 = vmatprep.subr.mxu0 0.0
      %1046 = vmatpush2.xpose.msra.mxu0 0.0
      %1047 = vmatprep.subr.mxu0 0.0
      %1048 = vmatpush2.xpose.msra.mxu0 0.0
      %1049 = vmatprep.mubr.f32.mxu0 0.0
      %v1050 = vand.u32 %v598, 4294901760
      %1051 = vmatmul.mubr.f32.gmra.mxu0 %v1050
      %v1052 = vpop.f32.mrf.mxu0
      %v1053 = vadd.f32 %v962, %v1052
      %v1054 = vpop.f32.mrf.mxu0
      %1055 = vmatprep.mubr.f32.mxu0 0.0
      %v1056 = vand.u32 %v601, 4294901760
      %1057 = vmatmul.mubr.f32.gmra.mxu0 %v1056
      %v1058 = vpop.f32.mrf.mxu0
      %v1059 = vadd.f32 %v970, %v1058
      %v1060 = vpop.f32.mrf.mxu0
      %1061 = vdwg.mxu0
      %1062 = vmatprep.subr.mxu0 0.0
      %1063 = vmatpush1.xpose.msra.mxu0 0.0
      %1064 = vmatprep.subr.mxu0 0.0
      %1065 = vmatpush1.xpose.msra.mxu0 0.0
      %1066 = vmatprep.subr.mxu0 0.0
      %1067 = vmatpush1.xpose.msra.mxu0 0.0
      %1068 = vmatprep.subr.mxu0 0.0
      %1069 = vmatpush1.xpose.msra.mxu0 0.0
      %1070 = vmatprep.subr.mxu0 0.0
      %1071 = vmatpush1.xpose.msra.mxu0 0.0
      %1072 = vmatprep.subr.mxu0 0.0
      %1073 = vmatpush1.xpose.msra.mxu0 0.0
      %1074 = vmatprep.subr.mxu0 0.0
      %1075 = vmatpush1.xpose.msra.mxu0 0.0
      %1076 = vmatprep.subr.mxu0 0.0
      %1077 = vmatpush1.xpose.msra.mxu0 0.0
      %1078 = vmatprep.subr.mxu0 0.0
      %1079 = vmatpush1.xpose.msra.mxu0 0.0
      %1080 = vmatprep.subr.mxu0 0.0
      %1081 = vmatpush1.xpose.msra.mxu0 0.0
      %1082 = vmatprep.subr.mxu0 0.0
      %1083 = vmatpush1.xpose.msra.mxu0 0.0
      %1084 = vmatprep.subr.mxu0 0.0
      %1085 = vmatpush1.xpose.msra.mxu0 0.0
      %1086 = vmatprep.subr.mxu0 0.0
      %v1087 = vand.u32 %v613, 4294901760
      %1088 = vmatpush1.xpose.msra.mxu0 %v1087
      %1089 = vmatprep.subr.mxu0 0.0
      %v1090 = vand.u32 %v610, 4294901760
      %1091 = vmatpush1.xpose.msra.mxu0 %v1090
      %1092 = vmatprep.subr.mxu0 0.0
      %v1093 = vand.u32 %v607, 4294901760
      %1094 = vmatpush1.xpose.msra.mxu0 %v1093
      %1095 = vmatprep.subr.mxu0 0.0
      %v1096 = vand.u32 %v604, 4294901760
      %1097 = vmatpush1.xpose.msra.mxu0 %v1096
      %1098 = vmatprep.subr.mxu0 0.0
      %1099 = vmatpush2.xpose.msra.mxu0 0.0
      %1100 = vmatprep.subr.mxu0 0.0
      %1101 = vmatpush2.xpose.msra.mxu0 0.0
      %1102 = vmatprep.subr.mxu0 0.0
      %1103 = vmatpush2.xpose.msra.mxu0 0.0
      %1104 = vmatprep.subr.mxu0 0.0
      %1105 = vmatpush2.xpose.msra.mxu0 0.0
      %1106 = vmatprep.subr.mxu0 0.0
      %1107 = vmatpush2.xpose.msra.mxu0 0.0
      %1108 = vmatprep.subr.mxu0 0.0
      %1109 = vmatpush2.xpose.msra.mxu0 0.0
      %1110 = vmatprep.subr.mxu0 0.0
      %1111 = vmatpush2.xpose.msra.mxu0 0.0
      %1112 = vmatprep.subr.mxu0 0.0
      %1113 = vmatpush2.xpose.msra.mxu0 0.0
      %1114 = vmatprep.subr.mxu0 0.0
      %1115 = vmatpush2.xpose.msra.mxu0 0.0
      %1116 = vmatprep.subr.mxu0 0.0
      %1117 = vmatpush2.xpose.msra.mxu0 0.0
      %1118 = vmatprep.subr.mxu0 0.0
      %1119 = vmatpush2.xpose.msra.mxu0 0.0
      %1120 = vmatprep.subr.mxu0 0.0
      %1121 = vmatpush2.xpose.msra.mxu0 0.0
      %1122 = vmatprep.subr.mxu0 0.0
      %1123 = vmatpush2.xpose.msra.mxu0 0.0
      %1124 = vmatprep.subr.mxu0 0.0
      %1125 = vmatpush2.xpose.msra.mxu0 0.0
      %1126 = vmatprep.subr.mxu0 0.0
      %1127 = vmatpush2.xpose.msra.mxu0 0.0
      %1128 = vmatprep.subr.mxu0 0.0
      %1129 = vmatpush2.xpose.msra.mxu0 0.0
      %1130 = vmatprep.mubr.f32.mxu0 0.0
      %v1131 = vand.u32 %v598, 4294901760
      %1132 = vmatmul.mubr.f32.gmra.mxu0 %v1131
      %v1133 = vpop.f32.mrf.mxu0
      %v1134 = vadd.f32 %v1053, %v1133
      %v1135 = vpop.f32.mrf.mxu0
      %1136 = vmatprep.mubr.f32.mxu0 0.0
      %v1137 = vand.u32 %v601, 4294901760
      %1138 = vmatmul.mubr.f32.gmra.mxu0 %v1137
      %v1139 = vpop.f32.mrf.mxu0
      %v1140 = vadd.f32 %v1059, %v1139
      %v1141 = vpop.f32.mrf.mxu0
      %1142 = vdwg.mxu0
      %v1143 = vld [vmem:[#allocation2] sm:$0xff]
      %v1144 = vld [vmem:[#allocation2 + $0x8] sm:$0xff]
      %v1145 = vadd.f32 %v1143, %v1134
      %v1146 = vadd.f32 %v1144, %v1140
      %v1147 = vld [vmem:[%s4] sm:$0x1]
      %v1149 = vlaneseq
      %v1150 = vshrl.u32 %v1149, 7
      %v1151 = vsub.s32 0, %v1150
      %v1152 = vrot.slane %v1147, %v1151
      %v1154 = vadd.f32 %v1145, %v1152
      %v1155 = vadd.f32 %v1146, %v1152
      %1156 = vst.msk [vmem:[#allocation3] sm:$0xff] %vm36, %v1154
      %1157 = vst.msk [vmem:[#allocation3 + $0x8] sm:$0xff] %vm36, %v1155
    $region29: #{tpu_custom_call.1} parent=1 // pred_fallthru
      _
    // Predicated region
    $region30: #{tpu_custom_call.1} parent=1 // pred_check
      _
    $region31: #{tpu_custom_call.1} parent=1 // pred_check_branch
      %1159 = sbr.rel (0) target = $region33
    $region32: #{tpu_custom_call.1} parent=1 // pred_region
      %s1161 = ssub.s32 256, 256
      %1162 = vsyncadd [#allocation4], %s1161
      %s1163 = sshll.u32 [#allocation3], 4
      %s1164 = int_to_ptr.vmem [resolvable:$true] %s1163
      %1169 = dma.vmem_to_hbm [thread:$0]  %s1164, 256, %s5, [#allocation4], 128, 128, 8
    $region33: #{tpu_custom_call.1} parent=1 // pred_fallthru
      _
    // Predicated region
    $region34: #{tpu_custom_call.1} parent=1 // pred_check
      _
    $region35: #{tpu_custom_call.1} parent=1 // pred_check_branch
      %1171 = sbr.rel (0) target = $region37
    $region36: #{tpu_custom_call.1} parent=1 // pred_region
      %1172 = dma.done [#allocation4], 256
    $region37: #{tpu_custom_call.1} parent=1 // pred_fallthru
      _
    %1173 = vsyncpa [#allocation4], 1

</llo_original>
